<compile_context>
chip_gen: v7x
topology: tpu7x:2x2x1
jax: 0.10.0
libtpu: 0.0.40
codegen_flags: <defaults>
</compile_context>

<pallas_src>
import functools

import numpy as np

import jax
import jax.numpy as jnp
from jax.experimental import pallas as pl
from jax.experimental.pallas import tpu as pltpu


# ---------------------------------------------------------------------------
# Interpolation-matrix construction (trace-time numpy; depends only on static
# shapes / scale; exact PyTorch align_corners=False semantics).
# ---------------------------------------------------------------------------
def _interp_matrix_np(in_size: int, scale: int) -> np.ndarray:
    """Bilinear interpolation matrix A (out_size, in_size), align_corners=False."""
    out_size = in_size * scale
    dst = np.arange(out_size, dtype=np.float32)
    # PyTorch area_pixel_compute_source_index (align_corners=False, non-cubic):
    # src = (dst + 0.5) / scale - 0.5, clamped below at 0.
    src = (dst + np.float32(0.5)) / np.float32(scale) - np.float32(0.5)
    src = np.maximum(src, np.float32(0.0))
    i0 = np.minimum(np.floor(src).astype(np.int64), in_size - 1)
    i1 = np.minimum(i0 + 1, in_size - 1)
    l1 = (src - i0.astype(np.float32)).astype(np.float32)
    l0 = (np.float32(1.0) - l1).astype(np.float32)
    a = np.zeros((out_size, in_size), dtype=np.float32)
    np.add.at(a, (np.arange(out_size), i0), l0)
    np.add.at(a, (np.arange(out_size), i1), l1)
    return a


def _exact_in(a: np.ndarray, dtype) -> bool:
    """True iff every entry of `a` round-trips exactly through `dtype`."""
    try:
        cast = np.asarray(a, dtype=dtype).astype(np.float32)
        return bool(np.array_equal(cast, a))
    except Exception:
        return False


# ---------------------------------------------------------------------------
# Hardware-aware tuning knobs.
# ---------------------------------------------------------------------------
@functools.lru_cache(maxsize=1)
def _hw_params():
    """(block_budget_bytes, vmem_limit_bytes, kron_bytes_limit, kron_hw_limit)."""
    try:
        phys = int(pltpu.get_tpu_info().vmem_capacity_bytes)
    except Exception:
        phys = 64 * 1024 * 1024          # conservative (v7x-sized) fallback
    try:
        kind = jax.devices()[0].device_kind.lower()
    except Exception:
        kind = ""
    if phys >= 100 * 1024 * 1024:        # v5e / v6e: 128 MiB physical VMEM
        budget, limit, kron_limit = 48 << 20, 100 << 20, 10 << 20
    else:                                # v7x: 64 MiB physical VMEM (per TC)
        budget, limit, kron_limit = 24 << 20, 48 << 20, 5 << 20
    # Kron path costs 2*H*W FLOPs per output element -> MXU-bound once H*W
    # grows; v5e's f32-decomposed 4x128^2 MXU hits that wall earliest.
    hw_limit = 256 if "v5" in kind else 512
    return budget, limit, kron_limit, hw_limit


def _pick_batch(nc: int, per_plane_bytes: int, budget_bytes: int):
    """Pick (planes-per-block B, grid size G).

    B is sized from the VMEM budget (no divisibility requirement; the wrapper
    pads to G*B planes).  G is forced >=4 when possible (>=2 iterations per
    v7x TensorCore) and even, so both cores get equal, pipelined work.
    """
    b_max = max(1, budget_bytes // max(per_plane_bytes, 1))
    b_max = min(b_max, nc)
    if nc >= 4:
        min_steps = 4
    elif nc >= 2:
        min_steps = 2
    else:
        min_steps = 1
    g = max(min_steps, -(-nc // b_max))
    if g > 1 and g % 2:
        g += 1                            # even #steps for the two v7x TCs
    b = -(-nc // g)
    return b, g


# ---------------------------------------------------------------------------
# Kernels.
# ---------------------------------------------------------------------------
def _kron_kernel(x_ref, a_ref, o_ref):
    # x_ref: (1, B, H*W)   a_ref: (H*W, Ho*Wo)   o_ref: (1, B, Ho*Wo)
    x = x_ref[0]
    if x.dtype != a_ref.dtype:
        x = x.astype(a_ref.dtype)
    out = jnp.dot(x, a_ref[...], preferred_element_type=jnp.float32)
    o_ref[0] = out.astype(o_ref.dtype)


def _separable_kernel(x_ref, ah_ref, awt_ref, o_ref, xw_ref):
    # x_ref: (1, B, H, W)  ah_ref: (Ho, H)  awt_ref: (W, Wo)
    # o_ref: (1, B, Ho, Wo)  xw_ref (scratch): (B, H, Wo) f32
    _, b, h, w = x_ref.shape
    wo = awt_ref.shape[1]
    x = x_ref[0]
    if x.dtype != awt_ref.dtype:
        x = x.astype(awt_ref.dtype)
    # W-interp: one large-M flat matmul across all planes -> f32 scratch.
    xw_ref[...] = jnp.dot(x.reshape(b * h, w), awt_ref[...],
                          preferred_element_type=jnp.float32).reshape(b, h, wo)
    # H-interp: per-plane (Ho,H)@(H,Wo); single A_h tile, no broadcast copies.
    ah = ah_ref[...].astype(jnp.float32)

    @pl.loop(0, b, unroll=b <= 8)
    def _(i):
        o_ref[0, i] = jnp.dot(ah, xw_ref[i],
                              preferred_element_type=jnp.float32
                              ).astype(o_ref.dtype)


# ---------------------------------------------------------------------------
# Wrapper.
# ---------------------------------------------------------------------------
@functools.partial(jax.jit, static_argnames=("up_scale",))
def bilinear_upsample(x: jnp.ndarray, up_scale: int) -> jnp.ndarray:
    """x: (N, C, H, W) -> (N, C, H*s, W*s), bilinear, align_corners=False."""
    N, C, H, W = x.shape
    Ho, Wo = H * up_scale, W * up_scale
    nc = N * C
    isize = x.dtype.itemsize

    budget, vmem_limit, kron_limit, hw_limit = _hw_params()
    cparams = pltpu.CompilerParams(
        dimension_semantics=("parallel",),
        vmem_limit_bytes=vmem_limit,
    )

    a_h_np = _interp_matrix_np(H, up_scale)       # (Ho, H) f32
    a_w_np = _interp_matrix_np(W, up_scale)       # (Wo, W) f32

    kron_bytes_f32 = (H * W) * (Ho * Wo) * 4
    kron_ok = (kron_bytes_f32 <= kron_limit) and (H * W <= hw_limit)
    kron_dense = (Ho * Wo) % 128 == 0
    sep_dense = Wo % 128 == 0
    use_kron = kron_ok and ((Wo < 128) or (kron_dense and not sep_dense))
    # TODO(synk): when neither Ho*Wo nor Wo is a multiple of 128, pad the
    # output lane dim (and slice in the wrapper) to avoid masked vst.msk stores.

    if use_kron:
        # One lane-dense matmul per block: (B, H*W) @ (H*W, Ho*Wo).
        a_kt_np = np.kron(a_h_np, a_w_np).T.copy()          # (H*W, Ho*Wo)
        bf16_ok = (x.dtype == jnp.bfloat16) and _exact_in(a_kt_np, jnp.bfloat16)
        w_dtype = jnp.bfloat16 if bf16_ok else jnp.float32
        a_kt = jnp.asarray(a_kt_np, dtype=w_dtype)
        a_bytes = a_kt_np.size * np.dtype(w_dtype).itemsize  # single VMEM copy
        per_plane = (2 * H * W * isize + 2 * Ho * Wo * isize
                     + 4 * (H * W + Ho * Wo))
        B, G = _pick_batch(nc, per_plane, budget - a_bytes)
        planes = B * G
        x_p = x.reshape(nc, H * W)
        if planes != nc:
            x_p = jnp.pad(x_p, ((0, planes - nc), (0, 0)))
        x_in = x_p.reshape(G, B, H * W)
        cost = pl.CostEstimate(
            flops=2 * planes * (H * W) * (Ho * Wo),
            transcendentals=0,
            bytes_accessed=planes * (H * W + Ho * Wo) * isize + a_bytes)
        out = pl.pallas_call(
            _kron_kernel,
            out_shape=jax.ShapeDtypeStruct((G, B, Ho * Wo), x.dtype),
            grid_spec=pltpu.PrefetchScalarGridSpec(
                num_scalar_prefetch=0,
                grid=(G,),
                in_specs=[
                    pl.BlockSpec((1, B, H * W), lambda g: (g, 0, 0)),
                    # Whole interpolation matrix, resident once in VMEM
                    # (no per-step DMA, no double buffering).
                    pl.BlockSpec(memory_space=pltpu.MemorySpace.VMEM),
                ],
                out_specs=pl.BlockSpec((1, B, Ho * Wo), lambda g: (g, 0, 0)),
            ),
            compiler_params=cparams,
            cost_estimate=cost,
        )(x_in, a_kt)
        out = out.reshape(planes, Ho * Wo)
        if planes != nc:
            out = out[:nc]
        return out.reshape(N, C, Ho, Wo)

    # ----- Separable path (W-interp then H-interp), lane-dense when Wo%128==0.
    bf16_ok = (x.dtype == jnp.bfloat16 and _exact_in(a_h_np, jnp.bfloat16)
               and _exact_in(a_w_np, jnp.bfloat16))
    w_dtype = jnp.bfloat16 if bf16_ok else jnp.float32
    w_isize = np.dtype(w_dtype).itemsize
    a_h = jnp.asarray(a_h_np, dtype=w_dtype)                 # (Ho, H)
    a_wt = jnp.asarray(a_w_np.T.copy(), dtype=w_dtype)       # (W, Wo)
    fixed = (Ho * H + W * Wo) * w_isize + 4 * (Ho * H + Ho * Wo)
    per_plane = (2 * H * W * isize + 2 * Ho * Wo * isize
                 + 4 * (H * Wo + H * W))
    B, G = _pick_batch(nc, per_plane, budget - fixed)
    planes = B * G
    x_p = x.reshape(nc, H, W)
    if planes != nc:
        x_p = jnp.pad(x_p, ((0, planes - nc), (0, 0), (0, 0)))
    x_in = x_p.reshape(G, B, H, W)
    cost = pl.CostEstimate(
        flops=2 * planes * (H * W * Wo + Ho * H * Wo),
        transcendentals=0,
        bytes_accessed=planes * (H * W + Ho * Wo) * isize
                       + (Ho * H + W * Wo) * w_isize)
    out = pl.pallas_call(
        _separable_kernel,
        out_shape=jax.ShapeDtypeStruct((G, B, Ho, Wo), x.dtype),
        grid_spec=pltpu.PrefetchScalarGridSpec(
            num_scalar_prefetch=0,
            grid=(G,),
            in_specs=[
                pl.BlockSpec((1, B, H, W), lambda g: (g, 0, 0, 0)),
                pl.BlockSpec(memory_space=pltpu.MemorySpace.VMEM),
                pl.BlockSpec(memory_space=pltpu.MemorySpace.VMEM),
            ],
            out_specs=pl.BlockSpec((1, B, Ho, Wo), lambda g: (g, 0, 0, 0)),
            scratch_shapes=[pltpu.VMEM((B, H, Wo), jnp.float32)],
        ),
        compiler_params=cparams,
        cost_estimate=cost,
    )(x_in, a_h, a_wt)
    out = out.reshape(planes, Ho, Wo)
    if planes != nc:
        out = out[:nc]
    return out.reshape(N, C, Ho, Wo)


def _reference(x, up_scale):
    """Pure-JAX reference: separable interpolation via einsum (HIGHEST precision)."""
    a_h = jnp.asarray(_interp_matrix_np(x.shape[2], up_scale))
    a_w = jnp.asarray(_interp_matrix_np(x.shape[3], up_scale))
    y = jnp.einsum("oh,nchw,pw->ncop", a_h, x.astype(jnp.float32), a_w,
                   precision=jax.lax.Precision.HIGHEST)
    return y.astype(x.dtype)


if __name__ == "__main__":
    key = jax.random.PRNGKey(0)

    # Main test shape from the module spec (exercises the Kronecker path).
    N, C, H, W = 2, 4, 16, 16
    up_scale = 2
    x = jax.random.normal(key, (N, C, H, W), dtype=jnp.float32)

    out = jax.block_until_ready(bilinear_upsample(x, up_scale))
    assert out.shape == (N, C, H * up_scale, W * up_scale), out.shape
    ref = _reference(x, up_scale)
    # Tolerance allows for the MXU's default f32 matmul precision in-kernel
    # (reference uses Precision.HIGHEST).
    assert jnp.allclose(out, ref, atol=1e-3, rtol=1e-3), "mismatch (kron path)"

    # Secondary check exercising the lane-dense separable path (Wo >= 128).
    x2 = jax.random.normal(jax.random.PRNGKey(1), (1, 2, 64, 64), dtype=jnp.float32)
    out2 = jax.block_until_ready(bilinear_upsample(x2, 2))
    ref2 = _reference(x2, 2)
    assert out2.shape == (1, 2, 128, 128), out2.shape
    assert jnp.allclose(out2, ref2, atol=1e-3, rtol=1e-3), "mismatch (separable path)"

    # bf16 fast path (exact power-of-two weights) + non-divisor N*C (padding path).
    x3 = jax.random.normal(jax.random.PRNGKey(2), (2, 3, 16, 16)).astype(jnp.bfloat16)
    out3 = jax.block_until_ready(bilinear_upsample(x3, 2))
    ref3 = _reference(x3, 2)
    assert out3.shape == (2, 3, 32, 32), out3.shape
    assert jnp.allclose(out3.astype(jnp.float32), ref3.astype(jnp.float32),
                        atol=5e-2, rtol=5e-2), "mismatch (bf16 kron path)"

    print("KERNEL_OK")
</pallas_src>

<mosaic_0001>
module attributes {stable_mosaic.version = 11 : i64} {
  func.func @_kron_kernel(%arg0: i32, %arg1: memref<1x2x256xf32, #tpu.memory_space<vmem>>, %arg2: memref<256x1024xf32, #tpu.memory_space<vmem>>, %arg3: memref<1x2x1024xf32, #tpu.memory_space<vmem>>) attributes {dimension_semantics = [#tpu.dimension_semantics<parallel>], iteration_bounds = array<i64: 4>, scalar_prefetch = 0 : i64, scratch_operands = 0 : i64, tpu.core_type = #tpu.core_type<tc>, window_params = [{transform_indices = @transform_0, window_bounds = array<i64: 1, 2, 256>}, {pipeline_mode = #tpu.pipeline_mode<synchronous>, transform_indices = @transform_1, window_bounds = array<i64: 256, 1024>}, {transform_indices = @transform_2, window_bounds = array<i64: 1, 2, 1024>}]} {
    %c0 = arith.constant 0 : index
    %c0_0 = arith.constant 0 : index
    %c0_1 = arith.constant 0 : index
    %0 = vector.load %arg1[%c0, %c0_0, %c0_1] : memref<1x2x256xf32, #tpu.memory_space<vmem>>, vector<1x2x256xf32>
    %1 = vector.shape_cast %0 : vector<1x2x256xf32> to vector<2x256xf32>
    %c0_2 = arith.constant 0 : index
    %c0_3 = arith.constant 0 : index
    %2 = vector.load %arg2[%c0_2, %c0_3] : memref<256x1024xf32, #tpu.memory_space<vmem>>, vector<256x1024xf32>
    %cst = arith.constant dense<0.000000e+00> : vector<2x1024xf32>
    %3 = tpu.matmul %1, %2, %cst {dimension_numbers = #tpu.dot_dimension_numbers<[1], [0], [0], [1], [0, 0, 1, 1], [], []>} : vector<2x256xf32>, vector<256x1024xf32>, vector<2x1024xf32> -> vector<2x1024xf32>
    %c0_4 = arith.constant 0 : index
    %c0_5 = arith.constant 0 : index
    %c0_6 = arith.constant 0 : index
    %4 = vector.load %arg3[%c0_4, %c0_5, %c0_6] : memref<1x2x1024xf32, #tpu.memory_space<vmem>>, vector<1x2x1024xf32>
    %5 = vector.shape_cast %4 : vector<1x2x1024xf32> to vector<2x1024xf32>
    %6 = vector.shape_cast %3 : vector<2x1024xf32> to vector<1x2x1024xf32>
    tpu.vector_store %arg3[%c0_4, %c0_5, %c0_6], %6 {strides = array<i32>} : memref<1x2x1024xf32, #tpu.memory_space<vmem>>, vector<1x2x1024xf32>,
    return
  }
  func.func @transform_0(%arg0: i32) -> (i32, i32, i32) {
    %c0_i32 = arith.constant 0 : i32
    %c0_i32_0 = arith.constant 0 : i32
    %c0_i32_1 = arith.constant 0 : i32
    return %arg0, %c0_i32, %c0_i32_0 : i32, i32, i32
  }
  func.func @transform_1(%arg0: i32) -> (i32, i32) {
    %c0_i32 = arith.constant 0 : i32
    %c0_i32_0 = arith.constant 0 : i32
    %c0_i32_1 = arith.constant 0 : i32
    return %c0_i32, %c0_i32_0 : i32, i32
  }
  func.func @transform_2(%arg0: i32) -> (i32, i32, i32) {
    %c0_i32 = arith.constant 0 : i32
    %c0_i32_0 = arith.constant 0 : i32
    %c0_i32_1 = arith.constant 0 : i32
    return %arg0, %c0_i32, %c0_i32_0 : i32, i32, i32
  }
}

</mosaic_0001>

<llo_original>
// kernel: bilinear_upsample.1
$region0: #{bilinear_upsample.1}
  #allocation0 [shape = 'u32[]', space=smem, size = 0x4, offset = 0x4, fixed_abs, tag = 'smem constant byte address 0x4 - core index']
  #allocation1 [shape = 'u32[144,128]{1,0:T(1,128)}', space=vmem, size = 0x12000, scoped, tag = 'internal scratch']
  %s0 = inlined_call_operand.vmem [shape: f32[4,2,256], index: 0, kind: input, shape index: {}]
  %s1 = inlined_call_operand.hbm [shape: f32[256,1024], index: 1, kind: input, shape index: {}]
  %s2 = inlined_call_operand.vmem [shape: f32[4,2,1024], index: 2, kind: output, shape index: {}]
  %s3 = sld [smem:[#allocation0]]
  $region45: #{bilinear_upsample.1} parent=0
    _
  %s5 = ssub.s32 1, %s3
  %s6 = scalar_select 0, %s5, %s3
  $region1: #{bilinear_upsample.1} parent=0
    #allocation2 [shape = 'u8[1048576]{0}', space=vmem, size = 0x100000, scoped, tag = 'input window, operand 1, single buffered']
    #allocation3 [shape = 's32[2]{0}', space=sflag, size = 0x8, scoped, tag = 'scoped memory for bilinear_upsample.1']
    %7 = vsyncpa [#allocation3], 0
    loop: start=0, step=1, limit=6
    $region2: #{bilinear_upsample.1} parent=1 // loop_pre_header
      _
    $region3: #{bilinear_upsample.1} parent=1 // loop_header
      %s9 = sphi 0, %s13
      %p10 = scmp.ge.s32.totalorder %s9, 6
      %s19 = sphi 0, %s21
      %s22 = sphi 0, %s19
      %s23 = sphi 0, %s22
      %s39 = sphi 0, %s23
      %s43 = sphi 0, %s43
      %s45 = sphi 0, %s43
      %s46 = sphi 0, %s45
      %s60 = sphi 0, %s46
      %s66 = sphi 0, %s68
      %s69 = sphi 0, %s66
      %s70 = sphi 0, %s69
      %s86 = sphi 0, %s70
    $region4: #{bilinear_upsample.1} parent=1 // loop_header_branch
      %12 = sbr.rel (%p10) target = $region8
    $region5: #{bilinear_upsample.1} parent=1 // loop_body
      %s14 = ssub.s32 %s9, 1
      %s15 = ssub.s32 %s9, 2
      %s16 = sadd.s32 %s9, 1
      %s17 = ssub.s32 %s9, %s16
      %p18 = scmp.eq.s32.totalorder %s17, 0
      %s20 = sadd.s32 %s19, 1
      %s21 = scalar_select %p18, %s19, %s20
      %p24 = pneg %p18
      %p25 = scmp.eq.s32.totalorder %s9, 3
      %p26 = por %p24, %p25
      %p27 = scmp.ne.s32.totalorder %s19, %s22
      %p28 = scmp.eq.s32.totalorder %s9, 0
      %p29 = por %p27, %p28
      %p30 = scmp.ne.s32.totalorder %s19, %s22
      %p31 = scmp.eq.s32.totalorder %s14, 3
      %p32 = por %p30, %p31
      %p33 = scmp.ne.s32.totalorder %s22, %s23
      %p34 = scmp.eq.s32.totalorder %s14, 0
      %p35 = por %p33, %p34
      %p36 = scmp.ne.s32.totalorder %s22, %s23
      %p37 = scmp.eq.s32.totalorder %s15, 3
      %p38 = por %p36, %p37
      %p40 = scmp.ne.s32.totalorder %s23, %s39
      %p41 = scmp.eq.s32.totalorder %s15, 0
      %p42 = por %p40, %p41
      %s44 = sadd.s32 %s43, 1
      %p47 = scmp.eq.s32.totalorder %s9, 3
      %p48 = scmp.ne.s32.totalorder %s43, %s45
      %p49 = scmp.eq.s32.totalorder %s9, 0
      %p50 = por %p48, %p49
      %p51 = scmp.ne.s32.totalorder %s43, %s45
      %p52 = scmp.eq.s32.totalorder %s14, 3
      %p53 = por %p51, %p52
      %p54 = scmp.ne.s32.totalorder %s45, %s46
      %p55 = scmp.eq.s32.totalorder %s14, 0
      %p56 = por %p54, %p55
      %p57 = scmp.ne.s32.totalorder %s45, %s46
      %p58 = scmp.eq.s32.totalorder %s15, 3
      %p59 = por %p57, %p58
      %p61 = scmp.ne.s32.totalorder %s46, %s60
      %p62 = scmp.eq.s32.totalorder %s15, 0
      %p63 = por %p61, %p62
      %s64 = ssub.s32 %s9, %s16
      %p65 = scmp.eq.s32.totalorder %s64, 0
      %s67 = sadd.s32 %s66, 1
      %s68 = scalar_select %p65, %s66, %s67
      %p71 = pneg %p65
      %p72 = scmp.eq.s32.totalorder %s9, 3
      %p73 = por %p71, %p72
      %p74 = scmp.ne.s32.totalorder %s66, %s69
      %p75 = scmp.eq.s32.totalorder %s9, 0
      %p76 = por %p74, %p75
      %p77 = scmp.ne.s32.totalorder %s66, %s69
      %p78 = scmp.eq.s32.totalorder %s14, 3
      %p79 = por %p77, %p78
      %p80 = scmp.ne.s32.totalorder %s69, %s70
      %p81 = scmp.eq.s32.totalorder %s14, 0
      %p82 = por %p80, %p81
      %p83 = scmp.ne.s32.totalorder %s69, %s70
      %p84 = scmp.eq.s32.totalorder %s15, 3
      %p85 = por %p83, %p84
      %p87 = scmp.ne.s32.totalorder %s70, %s86
      %p88 = scmp.eq.s32.totalorder %s15, 0
      %p89 = por %p87, %p88
      %p90 = scmp.le.s32.totalorder 1, %s9
      %p91 = scmp.lt.s32.totalorder %s9, 5
      %p92 = pnand %p90, %p91
      %p93 = pneg %p92
      // Predicated region
      $region9: #{bilinear_upsample.1} parent=5 // pred_check
        _
      $region10: #{bilinear_upsample.1} parent=5 // pred_check_branch
        %95 = sbr.rel (%p92) target = $region12
      $region11: #{bilinear_upsample.1} parent=5 // pred_region
        %s96 = ssub.s32 %s9, 1
        // Predicated region
        $region13: #{bilinear_upsample.1} parent=11 // pred_check
          %p97 = pneg %p56
        $region14: #{bilinear_upsample.1} parent=11 // pred_check_branch
          %99 = sbr.rel (%p97) target = $region16
        $region15: #{bilinear_upsample.1} parent=11 // pred_region
          %s101 = ssub.s32 32768, 32768
          %102 = vsyncadd [#allocation3], %s101
          %s103 = sshll.u32 [#allocation2], 4
          %s104 = int_to_ptr.vmem [resolvable:$true] %s103
          %109 = dma.hbm_to_vmem [thread:$0]  %s1, 32768, %s104, [#allocation3], 1024, 1024, 64
        $region16: #{bilinear_upsample.1} parent=11 // pred_fallthru
          _
      $region12: #{bilinear_upsample.1} parent=5 // pred_fallthru
        _
      %p110 = scmp.lt.s32.totalorder %s9, 4
      // Predicated region
      $region17: #{bilinear_upsample.1} parent=5 // pred_check
        %p111 = pneg %p110
      $region18: #{bilinear_upsample.1} parent=5 // pred_check_branch
        %113 = sbr.rel (%p111) target = $region20
      $region19: #{bilinear_upsample.1} parent=5 // pred_region
        // Predicated region
        $region21: #{bilinear_upsample.1} parent=19 // pred_check
          %p114 = pneg %p29
        $region22: #{bilinear_upsample.1} parent=19 // pred_check_branch
          %116 = sbr.rel (%p114) target = $region24
        $region23: #{bilinear_upsample.1} parent=19 // pred_region
          %p117 = scmp.lt.s32.totalorder %s9, 3
          %s118 = scalar_select %p117, %s9, 3
          %s119 = smul.addr %s118, 2
          %s120 = smul.addr %s119, 2
          %s121 = scalar_lea.vmem %s0, %s120
        $region24: #{bilinear_upsample.1} parent=19 // pred_fallthru
          _
      $region20: #{bilinear_upsample.1} parent=5 // pred_fallthru
        _
      %p122 = scmp.le.s32.totalorder 1, %s9
      %p123 = scmp.lt.s32.totalorder %s9, 5
      %p124 = pnand %p122, %p123
      %p125 = pneg %p124
      // Predicated region
      $region25: #{bilinear_upsample.1} parent=5 // pred_check
        _
      $region26: #{bilinear_upsample.1} parent=5 // pred_check_branch
        %127 = sbr.rel (%p124) target = $region28
      $region27: #{bilinear_upsample.1} parent=5 // pred_region
        %s128 = ssub.s32 %s9, 1
        // Predicated region
        $region29: #{bilinear_upsample.1} parent=27 // pred_check
          %p129 = pneg %p56
        $region30: #{bilinear_upsample.1} parent=27 // pred_check_branch
          %131 = sbr.rel (%p129) target = $region32
        $region31: #{bilinear_upsample.1} parent=27 // pred_region
          %132 = dma.done [#allocation3], 32768
        $region32: #{bilinear_upsample.1} parent=27 // pred_fallthru
          _
        %p133 = scmp.lt.s32.totalorder %s14, 3
        %s134 = scalar_select %p133, %s14, 3
        %s135 = smul.addr %s134, 2
        %s136 = smul.addr %s135, 2
        %s137 = scalar_lea.vmem %s0, %s136
        %p138 = pneg %p35
        %p139 = pneg %p32
        %p140 = pneg %p56
        %p141 = pneg %p53
        %p142 = pneg %p82
        %p143 = pneg %p79
        %p144 = scmp.lt.s32.totalorder %s14, 3
        %s145 = scalar_select %p144, %s14, 3
        %s146 = smul.addr %s145, 8
        %s147 = smul.addr %s146, 2
        %s148 = scalar_lea.vmem %s2, %s147
        %p149 = scmp.lt.s32.totalorder %s14, 3
        %s150 = scalar_select %p149, %s14, 3
        %s151 = smul.addr %s150, 2
        %s152 = smul.addr %s151, 2
        %s153 = scalar_lea.vmem %s0, %s152
        %p154 = scmp.lt.s32.totalorder %s14, 3
        %s155 = scalar_select %p154, %s14, 3
        %s156 = smul.addr %s155, 8
        %s157 = smul.addr %s156, 2
        %s158 = scalar_lea.vmem %s2, %s157
        %v159 = vld [vmem:[%s153] sm:$0xf]
        %v160 = vld [vmem:[#allocation2] sm:$0xff]
        %v161 = vld [vmem:[#allocation2 + $0x8] sm:$0xff]
        %v162 = vld [vmem:[#allocation2 + $0x10] sm:$0xff]
        %v163 = vld [vmem:[#allocation2 + $0x18] sm:$0xff]
        %v164 = vld [vmem:[#allocation2 + $0x20] sm:$0xff]
        %v165 = vld [vmem:[#allocation2 + $0x28] sm:$0xff]
        %v166 = vld [vmem:[#allocation2 + $0x30] sm:$0xff]
        %v167 = vld [vmem:[#allocation2 + $0x38] sm:$0xff]
        %v168 = vld [vmem:[#allocation2 + $0x40] sm:$0xff]
        %v169 = vld [vmem:[#allocation2 + $0x48] sm:$0xff]
        %v170 = vld [vmem:[#allocation2 + $0x50] sm:$0xff]
        %v171 = vld [vmem:[#allocation2 + $0x58] sm:$0xff]
        %v172 = vld [vmem:[#allocation2 + $0x60] sm:$0xff]
        %v173 = vld [vmem:[#allocation2 + $0x68] sm:$0xff]
        %v174 = vld [vmem:[#allocation2 + $0x70] sm:$0xff]
        %v175 = vld [vmem:[#allocation2 + $0x78] sm:$0xff]
        %v176 = vld [vmem:[#allocation2 + $0x80] sm:$0xff]
        %v177 = vld [vmem:[#allocation2 + $0x88] sm:$0xff]
        %v178 = vld [vmem:[#allocation2 + $0x90] sm:$0xff]
        %v179 = vld [vmem:[#allocation2 + $0x98] sm:$0xff]
        %v180 = vld [vmem:[#allocation2 + $0xa0] sm:$0xff]
        %v181 = vld [vmem:[#allocation2 + $0xa8] sm:$0xff]
        %v182 = vld [vmem:[#allocation2 + $0xb0] sm:$0xff]
        %v183 = vld [vmem:[#allocation2 + $0xb8] sm:$0xff]
        %v184 = vld [vmem:[#allocation2 + $0xc0] sm:$0xff]
        %v185 = vld [vmem:[#allocation2 + $0xc8] sm:$0xff]
        %v186 = vld [vmem:[#allocation2 + $0xd0] sm:$0xff]
        %v187 = vld [vmem:[#allocation2 + $0xd8] sm:$0xff]
        %v188 = vld [vmem:[#allocation2 + $0xe0] sm:$0xff]
        %v189 = vld [vmem:[#allocation2 + $0xe8] sm:$0xff]
        %v190 = vld [vmem:[#allocation2 + $0xf0] sm:$0xff]
        %v191 = vld [vmem:[#allocation2 + $0xf8] sm:$0xff]
        %v192 = vld [vmem:[#allocation2 + $0x100] sm:$0xff]
        %v193 = vld [vmem:[#allocation2 + $0x108] sm:$0xff]
        %v194 = vld [vmem:[#allocation2 + $0x110] sm:$0xff]
        %v195 = vld [vmem:[#allocation2 + $0x118] sm:$0xff]
        %v196 = vld [vmem:[#allocation2 + $0x120] sm:$0xff]
        %v197 = vld [vmem:[#allocation2 + $0x128] sm:$0xff]
        %v198 = vld [vmem:[#allocation2 + $0x130] sm:$0xff]
        %v199 = vld [vmem:[#allocation2 + $0x138] sm:$0xff]
        %v200 = vld [vmem:[#allocation2 + $0x140] sm:$0xff]
        %v201 = vld [vmem:[#allocation2 + $0x148] sm:$0xff]
        %v202 = vld [vmem:[#allocation2 + $0x150] sm:$0xff]
        %v203 = vld [vmem:[#allocation2 + $0x158] sm:$0xff]
        %v204 = vld [vmem:[#allocation2 + $0x160] sm:$0xff]
        %v205 = vld [vmem:[#allocation2 + $0x168] sm:$0xff]
        %v206 = vld [vmem:[#allocation2 + $0x170] sm:$0xff]
        %v207 = vld [vmem:[#allocation2 + $0x178] sm:$0xff]
        %v208 = vld [vmem:[#allocation2 + $0x180] sm:$0xff]
        %v209 = vld [vmem:[#allocation2 + $0x188] sm:$0xff]
        %v210 = vld [vmem:[#allocation2 + $0x190] sm:$0xff]
        %v211 = vld [vmem:[#allocation2 + $0x198] sm:$0xff]
        %v212 = vld [vmem:[#allocation2 + $0x1a0] sm:$0xff]
        %v213 = vld [vmem:[#allocation2 + $0x1a8] sm:$0xff]
        %v214 = vld [vmem:[#allocation2 + $0x1b0] sm:$0xff]
        %v215 = vld [vmem:[#allocation2 + $0x1b8] sm:$0xff]
        %v216 = vld [vmem:[#allocation2 + $0x1c0] sm:$0xff]
        %v217 = vld [vmem:[#allocation2 + $0x1c8] sm:$0xff]
        %v218 = vld [vmem:[#allocation2 + $0x1d0] sm:$0xff]
        %v219 = vld [vmem:[#allocation2 + $0x1d8] sm:$0xff]
        %v220 = vld [vmem:[#allocation2 + $0x1e0] sm:$0xff]
        %v221 = vld [vmem:[#allocation2 + $0x1e8] sm:$0xff]
        %v222 = vld [vmem:[#allocation2 + $0x1f0] sm:$0xff]
        %v223 = vld [vmem:[#allocation2 + $0x1f8] sm:$0xff]
        %v224 = vld [vmem:[#allocation2 + $0x200] sm:$0xff]
        %v225 = vld [vmem:[#allocation2 + $0x208] sm:$0xff]
        %v226 = vld [vmem:[#allocation2 + $0x210] sm:$0xff]
        %v227 = vld [vmem:[#allocation2 + $0x218] sm:$0xff]
        %v228 = vld [vmem:[#allocation2 + $0x220] sm:$0xff]
        %v229 = vld [vmem:[#allocation2 + $0x228] sm:$0xff]
        %v230 = vld [vmem:[#allocation2 + $0x230] sm:$0xff]
        %v231 = vld [vmem:[#allocation2 + $0x238] sm:$0xff]
        %v232 = vld [vmem:[#allocation2 + $0x240] sm:$0xff]
        %v233 = vld [vmem:[#allocation2 + $0x248] sm:$0xff]
        %v234 = vld [vmem:[#allocation2 + $0x250] sm:$0xff]
        %v235 = vld [vmem:[#allocation2 + $0x258] sm:$0xff]
        %v236 = vld [vmem:[#allocation2 + $0x260] sm:$0xff]
        %v237 = vld [vmem:[#allocation2 + $0x268] sm:$0xff]
        %v238 = vld [vmem:[#allocation2 + $0x270] sm:$0xff]
        %v239 = vld [vmem:[#allocation2 + $0x278] sm:$0xff]
        %v240 = vld [vmem:[#allocation2 + $0x280] sm:$0xff]
        %v241 = vld [vmem:[#allocation2 + $0x288] sm:$0xff]
        %v242 = vld [vmem:[#allocation2 + $0x290] sm:$0xff]
        %v243 = vld [vmem:[#allocation2 + $0x298] sm:$0xff]
        %v244 = vld [vmem:[#allocation2 + $0x2a0] sm:$0xff]
        %v245 = vld [vmem:[#allocation2 + $0x2a8] sm:$0xff]
        %v246 = vld [vmem:[#allocation2 + $0x2b0] sm:$0xff]
        %v247 = vld [vmem:[#allocation2 + $0x2b8] sm:$0xff]
        %v248 = vld [vmem:[#allocation2 + $0x2c0] sm:$0xff]
        %v249 = vld [vmem:[#allocation2 + $0x2c8] sm:$0xff]
        %v250 = vld [vmem:[#allocation2 + $0x2d0] sm:$0xff]
        %v251 = vld [vmem:[#allocation2 + $0x2d8] sm:$0xff]
        %v252 = vld [vmem:[#allocation2 + $0x2e0] sm:$0xff]
        %v253 = vld [vmem:[#allocation2 + $0x2e8] sm:$0xff]
        %v254 = vld [vmem:[#allocation2 + $0x2f0] sm:$0xff]
        %v255 = vld [vmem:[#allocation2 + $0x2f8] sm:$0xff]
        %v256 = vld [vmem:[#allocation2 + $0x300] sm:$0xff]
        %v257 = vld [vmem:[#allocation2 + $0x308] sm:$0xff]
        %v258 = vld [vmem:[#allocation2 + $0x310] sm:$0xff]
        %v259 = vld [vmem:[#allocation2 + $0x318] sm:$0xff]
        %v260 = vld [vmem:[#allocation2 + $0x320] sm:$0xff]
        %v261 = vld [vmem:[#allocation2 + $0x328] sm:$0xff]
        %v262 = vld [vmem:[#allocation2 + $0x330] sm:$0xff]
        %v263 = vld [vmem:[#allocation2 + $0x338] sm:$0xff]
        %v264 = vld [vmem:[#allocation2 + $0x340] sm:$0xff]
        %v265 = vld [vmem:[#allocation2 + $0x348] sm:$0xff]
        %v266 = vld [vmem:[#allocation2 + $0x350] sm:$0xff]
        %v267 = vld [vmem:[#allocation2 + $0x358] sm:$0xff]
        %v268 = vld [vmem:[#allocation2 + $0x360] sm:$0xff]
        %v269 = vld [vmem:[#allocation2 + $0x368] sm:$0xff]
        %v270 = vld [vmem:[#allocation2 + $0x370] sm:$0xff]
        %v271 = vld [vmem:[#allocation2 + $0x378] sm:$0xff]
        %v272 = vld [vmem:[#allocation2 + $0x380] sm:$0xff]
        %v273 = vld [vmem:[#allocation2 + $0x388] sm:$0xff]
        %v274 = vld [vmem:[#allocation2 + $0x390] sm:$0xff]
        %v275 = vld [vmem:[#allocation2 + $0x398] sm:$0xff]
        %v276 = vld [vmem:[#allocation2 + $0x3a0] sm:$0xff]
        %v277 = vld [vmem:[#allocation2 + $0x3a8] sm:$0xff]
        %v278 = vld [vmem:[#allocation2 + $0x3b0] sm:$0xff]
        %v279 = vld [vmem:[#allocation2 + $0x3b8] sm:$0xff]
        %v280 = vld [vmem:[#allocation2 + $0x3c0] sm:$0xff]
        %v281 = vld [vmem:[#allocation2 + $0x3c8] sm:$0xff]
        %v282 = vld [vmem:[#allocation2 + $0x3d0] sm:$0xff]
        %v283 = vld [vmem:[#allocation2 + $0x3d8] sm:$0xff]
        %v284 = vld [vmem:[#allocation2 + $0x3e0] sm:$0xff]
        %v285 = vld [vmem:[#allocation2 + $0x3e8] sm:$0xff]
        %v286 = vld [vmem:[#allocation2 + $0x3f0] sm:$0xff]
        %v287 = vld [vmem:[#allocation2 + $0x3f8] sm:$0xff]
        %v288 = vld [vmem:[#allocation2 + $0x400] sm:$0xff]
        %v289 = vld [vmem:[#allocation2 + $0x408] sm:$0xff]
        %v290 = vld [vmem:[#allocation2 + $0x410] sm:$0xff]
        %v291 = vld [vmem:[#allocation2 + $0x418] sm:$0xff]
        %v292 = vld [vmem:[#allocation2 + $0x420] sm:$0xff]
        %v293 = vld [vmem:[#allocation2 + $0x428] sm:$0xff]
        %v294 = vld [vmem:[#allocation2 + $0x430] sm:$0xff]
        %v295 = vld [vmem:[#allocation2 + $0x438] sm:$0xff]
        %v296 = vld [vmem:[#allocation2 + $0x440] sm:$0xff]
        %v297 = vld [vmem:[#allocation2 + $0x448] sm:$0xff]
        %v298 = vld [vmem:[#allocation2 + $0x450] sm:$0xff]
        %v299 = vld [vmem:[#allocation2 + $0x458] sm:$0xff]
        %v300 = vld [vmem:[#allocation2 + $0x460] sm:$0xff]
        %v301 = vld [vmem:[#allocation2 + $0x468] sm:$0xff]
        %v302 = vld [vmem:[#allocation2 + $0x470] sm:$0xff]
        %v303 = vld [vmem:[#allocation2 + $0x478] sm:$0xff]
        %v304 = vld [vmem:[#allocation2 + $0x480] sm:$0xff]
        %v305 = vld [vmem:[#allocation2 + $0x488] sm:$0xff]
        %v306 = vld [vmem:[#allocation2 + $0x490] sm:$0xff]
        %v307 = vld [vmem:[#allocation2 + $0x498] sm:$0xff]
        %v308 = vld [vmem:[#allocation2 + $0x4a0] sm:$0xff]
        %v309 = vld [vmem:[#allocation2 + $0x4a8] sm:$0xff]
        %v310 = vld [vmem:[#allocation2 + $0x4b0] sm:$0xff]
        %v311 = vld [vmem:[#allocation2 + $0x4b8] sm:$0xff]
        %v312 = vld [vmem:[#allocation2 + $0x4c0] sm:$0xff]
        %v313 = vld [vmem:[#allocation2 + $0x4c8] sm:$0xff]
        %v314 = vld [vmem:[#allocation2 + $0x4d0] sm:$0xff]
        %v315 = vld [vmem:[#allocation2 + $0x4d8] sm:$0xff]
        %v316 = vld [vmem:[#allocation2 + $0x4e0] sm:$0xff]
        %v317 = vld [vmem:[#allocation2 + $0x4e8] sm:$0xff]
        %v318 = vld [vmem:[#allocation2 + $0x4f0] sm:$0xff]
        %v319 = vld [vmem:[#allocation2 + $0x4f8] sm:$0xff]
        %v320 = vld [vmem:[#allocation2 + $0x500] sm:$0xff]
        %v321 = vld [vmem:[#allocation2 + $0x508] sm:$0xff]
        %v322 = vld [vmem:[#allocation2 + $0x510] sm:$0xff]
        %v323 = vld [vmem:[#allocation2 + $0x518] sm:$0xff]
        %v324 = vld [vmem:[#allocation2 + $0x520] sm:$0xff]
        %v325 = vld [vmem:[#allocation2 + $0x528] sm:$0xff]
        %v326 = vld [vmem:[#allocation2 + $0x530] sm:$0xff]
        %v327 = vld [vmem:[#allocation2 + $0x538] sm:$0xff]
        %v328 = vld [vmem:[#allocation2 + $0x540] sm:$0xff]
        %v329 = vld [vmem:[#allocation2 + $0x548] sm:$0xff]
        %v330 = vld [vmem:[#allocation2 + $0x550] sm:$0xff]
        %v331 = vld [vmem:[#allocation2 + $0x558] sm:$0xff]
        %v332 = vld [vmem:[#allocation2 + $0x560] sm:$0xff]
        %v333 = vld [vmem:[#allocation2 + $0x568] sm:$0xff]
        %v334 = vld [vmem:[#allocation2 + $0x570] sm:$0xff]
        %v335 = vld [vmem:[#allocation2 + $0x578] sm:$0xff]
        %v336 = vld [vmem:[#allocation2 + $0x580] sm:$0xff]
        %v337 = vld [vmem:[#allocation2 + $0x588] sm:$0xff]
        %v338 = vld [vmem:[#allocation2 + $0x590] sm:$0xff]
        %v339 = vld [vmem:[#allocation2 + $0x598] sm:$0xff]
        %v340 = vld [vmem:[#allocation2 + $0x5a0] sm:$0xff]
        %v341 = vld [vmem:[#allocation2 + $0x5a8] sm:$0xff]
        %v342 = vld [vmem:[#allocation2 + $0x5b0] sm:$0xff]
        %v343 = vld [vmem:[#allocation2 + $0x5b8] sm:$0xff]
        %v344 = vld [vmem:[#allocation2 + $0x5c0] sm:$0xff]
        %v345 = vld [vmem:[#allocation2 + $0x5c8] sm:$0xff]
        %v346 = vld [vmem:[#allocation2 + $0x5d0] sm:$0xff]
        %v347 = vld [vmem:[#allocation2 + $0x5d8] sm:$0xff]
        %v348 = vld [vmem:[#allocation2 + $0x5e0] sm:$0xff]
        %v349 = vld [vmem:[#allocation2 + $0x5e8] sm:$0xff]
        %v350 = vld [vmem:[#allocation2 + $0x5f0] sm:$0xff]
        %v351 = vld [vmem:[#allocation2 + $0x5f8] sm:$0xff]
        %v352 = vld [vmem:[#allocation2 + $0x600] sm:$0xff]
        %v353 = vld [vmem:[#allocation2 + $0x608] sm:$0xff]
        %v354 = vld [vmem:[#allocation2 + $0x610] sm:$0xff]
        %v355 = vld [vmem:[#allocation2 + $0x618] sm:$0xff]
        %v356 = vld [vmem:[#allocation2 + $0x620] sm:$0xff]
        %v357 = vld [vmem:[#allocation2 + $0x628] sm:$0xff]
        %v358 = vld [vmem:[#allocation2 + $0x630] sm:$0xff]
        %v359 = vld [vmem:[#allocation2 + $0x638] sm:$0xff]
        %v360 = vld [vmem:[#allocation2 + $0x640] sm:$0xff]
        %v361 = vld [vmem:[#allocation2 + $0x648] sm:$0xff]
        %v362 = vld [vmem:[#allocation2 + $0x650] sm:$0xff]
        %v363 = vld [vmem:[#allocation2 + $0x658] sm:$0xff]
        %v364 = vld [vmem:[#allocation2 + $0x660] sm:$0xff]
        %v365 = vld [vmem:[#allocation2 + $0x668] sm:$0xff]
        %v366 = vld [vmem:[#allocation2 + $0x670] sm:$0xff]
        %v367 = vld [vmem:[#allocation2 + $0x678] sm:$0xff]
        %v368 = vld [vmem:[#allocation2 + $0x680] sm:$0xff]
        %v369 = vld [vmem:[#allocation2 + $0x688] sm:$0xff]
        %v370 = vld [vmem:[#allocation2 + $0x690] sm:$0xff]
        %v371 = vld [vmem:[#allocation2 + $0x698] sm:$0xff]
        %v372 = vld [vmem:[#allocation2 + $0x6a0] sm:$0xff]
        %v373 = vld [vmem:[#allocation2 + $0x6a8] sm:$0xff]
        %v374 = vld [vmem:[#allocation2 + $0x6b0] sm:$0xff]
        %v375 = vld [vmem:[#allocation2 + $0x6b8] sm:$0xff]
        %v376 = vld [vmem:[#allocation2 + $0x6c0] sm:$0xff]
        %v377 = vld [vmem:[#allocation2 + $0x6c8] sm:$0xff]
        %v378 = vld [vmem:[#allocation2 + $0x6d0] sm:$0xff]
        %v379 = vld [vmem:[#allocation2 + $0x6d8] sm:$0xff]
        %v380 = vld [vmem:[#allocation2 + $0x6e0] sm:$0xff]
        %v381 = vld [vmem:[#allocation2 + $0x6e8] sm:$0xff]
        %v382 = vld [vmem:[#allocation2 + $0x6f0] sm:$0xff]
        %v383 = vld [vmem:[#allocation2 + $0x6f8] sm:$0xff]
        %v384 = vld [vmem:[#allocation2 + $0x700] sm:$0xff]
        %v385 = vld [vmem:[#allocation2 + $0x708] sm:$0xff]
        %v386 = vld [vmem:[#allocation2 + $0x710] sm:$0xff]
        %v387 = vld [vmem:[#allocation2 + $0x718] sm:$0xff]
        %v388 = vld [vmem:[#allocation2 + $0x720] sm:$0xff]
        %v389 = vld [vmem:[#allocation2 + $0x728] sm:$0xff]
        %v390 = vld [vmem:[#allocation2 + $0x730] sm:$0xff]
        %v391 = vld [vmem:[#allocation2 + $0x738] sm:$0xff]
        %v392 = vld [vmem:[#allocation2 + $0x740] sm:$0xff]
        %v393 = vld [vmem:[#allocation2 + $0x748] sm:$0xff]
        %v394 = vld [vmem:[#allocation2 + $0x750] sm:$0xff]
        %v395 = vld [vmem:[#allocation2 + $0x758] sm:$0xff]
        %v396 = vld [vmem:[#allocation2 + $0x760] sm:$0xff]
        %v397 = vld [vmem:[#allocation2 + $0x768] sm:$0xff]
        %v398 = vld [vmem:[#allocation2 + $0x770] sm:$0xff]
        %v399 = vld [vmem:[#allocation2 + $0x778] sm:$0xff]
        %v400 = vld [vmem:[#allocation2 + $0x780] sm:$0xff]
        %v401 = vld [vmem:[#allocation2 + $0x788] sm:$0xff]
        %v402 = vld [vmem:[#allocation2 + $0x790] sm:$0xff]
        %v403 = vld [vmem:[#allocation2 + $0x798] sm:$0xff]
        %v404 = vld [vmem:[#allocation2 + $0x7a0] sm:$0xff]
        %v405 = vld [vmem:[#allocation2 + $0x7a8] sm:$0xff]
        %v406 = vld [vmem:[#allocation2 + $0x7b0] sm:$0xff]
        %v407 = vld [vmem:[#allocation2 + $0x7b8] sm:$0xff]
        %v408 = vld [vmem:[#allocation2 + $0x7c0] sm:$0xff]
        %v409 = vld [vmem:[#allocation2 + $0x7c8] sm:$0xff]
        %v410 = vld [vmem:[#allocation2 + $0x7d0] sm:$0xff]
        %v411 = vld [vmem:[#allocation2 + $0x7d8] sm:$0xff]
        %v412 = vld [vmem:[#allocation2 + $0x7e0] sm:$0xff]
        %v413 = vld [vmem:[#allocation2 + $0x7e8] sm:$0xff]
        %v414 = vld [vmem:[#allocation2 + $0x7f0] sm:$0xff]
        %v415 = vld [vmem:[#allocation2 + $0x7f8] sm:$0xff]
        %v418 = vunpack.c.l.s4 1983009808
        %v419 = vunpack.c.0.s8 %v418
        %v420 = vlaneseq
        %v421 = vshrl.u32 %v420, 7
        %v422 = vsub.s32 %v419, %v421
        %v423 = vrot.slane %v159, %v422
        %v424 = vcombine.high %v423, %v423
        %427 = vmatprep.subr.mxu0 %v161
        %428 = vmatpush1.msra.mxu0 %v160
        %429 = vmatprep.subr.mxu0 %v169
        %430 = vmatpush1.msra.mxu0 %v168
        %431 = vmatprep.subr.mxu0 %v177
        %432 = vmatpush1.msra.mxu0 %v176
        %433 = vmatprep.subr.mxu0 %v185
        %434 = vmatpush1.msra.mxu0 %v184
        %435 = vmatprep.subr.mxu0 %v193
        %436 = vmatpush1.msra.mxu0 %v192
        %437 = vmatprep.subr.mxu0 %v201
        %438 = vmatpush1.msra.mxu0 %v200
        %439 = vmatprep.subr.mxu0 %v209
        %440 = vmatpush1.msra.mxu0 %v208
        %441 = vmatprep.subr.mxu0 %v217
        %442 = vmatpush1.msra.mxu0 %v216
        %443 = vmatprep.subr.mxu0 %v225
        %444 = vmatpush1.msra.mxu0 %v224
        %445 = vmatprep.subr.mxu0 %v233
        %446 = vmatpush1.msra.mxu0 %v232
        %447 = vmatprep.subr.mxu0 %v241
        %448 = vmatpush1.msra.mxu0 %v240
        %449 = vmatprep.subr.mxu0 %v249
        %450 = vmatpush1.msra.mxu0 %v248
        %451 = vmatprep.subr.mxu0 %v257
        %452 = vmatpush1.msra.mxu0 %v256
        %453 = vmatprep.subr.mxu0 %v265
        %454 = vmatpush1.msra.mxu0 %v264
        %455 = vmatprep.subr.mxu0 %v273
        %456 = vmatpush1.msra.mxu0 %v272
        %457 = vmatprep.subr.mxu0 %v281
        %458 = vmatpush1.msra.mxu0 %v280
        %459 = vmatprep.subr.mxu0 %v289
        %460 = vmatpush1.msra.mxu0 %v288
        %461 = vmatprep.subr.mxu0 %v297
        %462 = vmatpush1.msra.mxu0 %v296
        %463 = vmatprep.subr.mxu0 %v305
        %464 = vmatpush1.msra.mxu0 %v304
        %465 = vmatprep.subr.mxu0 %v313
        %466 = vmatpush1.msra.mxu0 %v312
        %467 = vmatprep.subr.mxu0 %v321
        %468 = vmatpush1.msra.mxu0 %v320
        %469 = vmatprep.subr.mxu0 %v329
        %470 = vmatpush1.msra.mxu0 %v328
        %471 = vmatprep.subr.mxu0 %v337
        %472 = vmatpush1.msra.mxu0 %v336
        %473 = vmatprep.subr.mxu0 %v345
        %474 = vmatpush1.msra.mxu0 %v344
        %475 = vmatprep.subr.mxu0 %v353
        %476 = vmatpush1.msra.mxu0 %v352
        %477 = vmatprep.subr.mxu0 %v361
        %478 = vmatpush1.msra.mxu0 %v360
        %479 = vmatprep.subr.mxu0 %v369
        %480 = vmatpush1.msra.mxu0 %v368
        %481 = vmatprep.subr.mxu0 %v377
        %482 = vmatpush1.msra.mxu0 %v376
        %483 = vmatprep.subr.mxu0 %v385
        %484 = vmatpush1.msra.mxu0 %v384
        %485 = vmatprep.subr.mxu0 %v393
        %486 = vmatpush1.msra.mxu0 %v392
        %487 = vmatprep.subr.mxu0 %v401
        %488 = vmatpush1.msra.mxu0 %v400
        %489 = vmatprep.subr.mxu0 %v409
        %490 = vmatpush1.msra.mxu0 %v408
        %491 = vmatprep.mubr.f32.mxu0 %v424
        %492 = vmatmul.mubr.f32.gmra.mrb[0].mxu0 %v423
        %v493 = vpop.f32.mrb[0].mxu0
        %v494 = vadd.f32 0.0, %v493
        %v495 = vpop.f32.mrb[0].mxu0
        %v496 = vadd.f32 0.0, %v495
        %497 = vdwg.mxu0
        %498 = vmatprep.subr.mxu0 %v163
        %499 = vmatpush1.msra.mxu0 %v162
        %500 = vmatprep.subr.mxu0 %v171
        %501 = vmatpush1.msra.mxu0 %v170
        %502 = vmatprep.subr.mxu0 %v179
        %503 = vmatpush1.msra.mxu0 %v178
        %504 = vmatprep.subr.mxu0 %v187
        %505 = vmatpush1.msra.mxu0 %v186
        %506 = vmatprep.subr.mxu0 %v195
        %507 = vmatpush1.msra.mxu0 %v194
        %508 = vmatprep.subr.mxu0 %v203
        %509 = vmatpush1.msra.mxu0 %v202
        %510 = vmatprep.subr.mxu0 %v211
        %511 = vmatpush1.msra.mxu0 %v210
        %512 = vmatprep.subr.mxu0 %v219
        %513 = vmatpush1.msra.mxu0 %v218
        %514 = vmatprep.subr.mxu0 %v227
        %515 = vmatpush1.msra.mxu0 %v226
        %516 = vmatprep.subr.mxu0 %v235
        %517 = vmatpush1.msra.mxu0 %v234
        %518 = vmatprep.subr.mxu0 %v243
        %519 = vmatpush1.msra.mxu0 %v242
        %520 = vmatprep.subr.mxu0 %v251
        %521 = vmatpush1.msra.mxu0 %v250
        %522 = vmatprep.subr.mxu0 %v259
        %523 = vmatpush1.msra.mxu0 %v258
        %524 = vmatprep.subr.mxu0 %v267
        %525 = vmatpush1.msra.mxu0 %v266
        %526 = vmatprep.subr.mxu0 %v275
        %527 = vmatpush1.msra.mxu0 %v274
        %528 = vmatprep.subr.mxu0 %v283
        %529 = vmatpush1.msra.mxu0 %v282
        %530 = vmatprep.subr.mxu0 %v291
        %531 = vmatpush1.msra.mxu0 %v290
        %532 = vmatprep.subr.mxu0 %v299
        %533 = vmatpush1.msra.mxu0 %v298
        %534 = vmatprep.subr.mxu0 %v307
        %535 = vmatpush1.msra.mxu0 %v306
        %536 = vmatprep.subr.mxu0 %v315
        %537 = vmatpush1.msra.mxu0 %v314
        %538 = vmatprep.subr.mxu0 %v323
        %539 = vmatpush1.msra.mxu0 %v322
        %540 = vmatprep.subr.mxu0 %v331
        %541 = vmatpush1.msra.mxu0 %v330
        %542 = vmatprep.subr.mxu0 %v339
        %543 = vmatpush1.msra.mxu0 %v338
        %544 = vmatprep.subr.mxu0 %v347
        %545 = vmatpush1.msra.mxu0 %v346
        %546 = vmatprep.subr.mxu0 %v355
        %547 = vmatpush1.msra.mxu0 %v354
        %548 = vmatprep.subr.mxu0 %v363
        %549 = vmatpush1.msra.mxu0 %v362
        %550 = vmatprep.subr.mxu0 %v371
        %551 = vmatpush1.msra.mxu0 %v370
        %552 = vmatprep.subr.mxu0 %v379
        %553 = vmatpush1.msra.mxu0 %v378
        %554 = vmatprep.subr.mxu0 %v387
        %555 = vmatpush1.msra.mxu0 %v386
        %556 = vmatprep.subr.mxu0 %v395
        %557 = vmatpush1.msra.mxu0 %v394
        %558 = vmatprep.subr.mxu0 %v403
        %559 = vmatpush1.msra.mxu0 %v402
        %560 = vmatprep.subr.mxu0 %v411
        %561 = vmatpush1.msra.mxu0 %v410
        %562 = vmatprep.mubr.f32.mxu0 %v424
        %563 = vmatmul.mubr.f32.gmra.mrb[0].mxu0 %v423
        %v564 = vpop.f32.mrb[0].mxu0
        %v565 = vadd.f32 0.0, %v564
        %v566 = vpop.f32.mrb[0].mxu0
        %v567 = vadd.f32 0.0, %v566
        %568 = vdwg.mxu0
        %569 = vmatprep.subr.mxu0 %v165
        %570 = vmatpush1.msra.mxu0 %v164
        %571 = vmatprep.subr.mxu0 %v173
        %572 = vmatpush1.msra.mxu0 %v172
        %573 = vmatprep.subr.mxu0 %v181
        %574 = vmatpush1.msra.mxu0 %v180
        %575 = vmatprep.subr.mxu0 %v189
        %576 = vmatpush1.msra.mxu0 %v188
        %577 = vmatprep.subr.mxu0 %v197
        %578 = vmatpush1.msra.mxu0 %v196
        %579 = vmatprep.subr.mxu0 %v205
        %580 = vmatpush1.msra.mxu0 %v204
        %581 = vmatprep.subr.mxu0 %v213
        %582 = vmatpush1.msra.mxu0 %v212
        %583 = vmatprep.subr.mxu0 %v221
        %584 = vmatpush1.msra.mxu0 %v220
        %585 = vmatprep.subr.mxu0 %v229
        %586 = vmatpush1.msra.mxu0 %v228
        %587 = vmatprep.subr.mxu0 %v237
        %588 = vmatpush1.msra.mxu0 %v236
        %589 = vmatprep.subr.mxu0 %v245
        %590 = vmatpush1.msra.mxu0 %v244
        %591 = vmatprep.subr.mxu0 %v253
        %592 = vmatpush1.msra.mxu0 %v252
        %593 = vmatprep.subr.mxu0 %v261
        %594 = vmatpush1.msra.mxu0 %v260
        %595 = vmatprep.subr.mxu0 %v269
        %596 = vmatpush1.msra.mxu0 %v268
        %597 = vmatprep.subr.mxu0 %v277
        %598 = vmatpush1.msra.mxu0 %v276
        %599 = vmatprep.subr.mxu0 %v285
        %600 = vmatpush1.msra.mxu0 %v284
        %601 = vmatprep.subr.mxu0 %v293
        %602 = vmatpush1.msra.mxu0 %v292
        %603 = vmatprep.subr.mxu0 %v301
        %604 = vmatpush1.msra.mxu0 %v300
        %605 = vmatprep.subr.mxu0 %v309
        %606 = vmatpush1.msra.mxu0 %v308
        %607 = vmatprep.subr.mxu0 %v317
        %608 = vmatpush1.msra.mxu0 %v316
        %609 = vmatprep.subr.mxu0 %v325
        %610 = vmatpush1.msra.mxu0 %v324
        %611 = vmatprep.subr.mxu0 %v333
        %612 = vmatpush1.msra.mxu0 %v332
        %613 = vmatprep.subr.mxu0 %v341
        %614 = vmatpush1.msra.mxu0 %v340
        %615 = vmatprep.subr.mxu0 %v349
        %616 = vmatpush1.msra.mxu0 %v348
        %617 = vmatprep.subr.mxu0 %v357
        %618 = vmatpush1.msra.mxu0 %v356
        %619 = vmatprep.subr.mxu0 %v365
        %620 = vmatpush1.msra.mxu0 %v364
        %621 = vmatprep.subr.mxu0 %v373
        %622 = vmatpush1.msra.mxu0 %v372
        %623 = vmatprep.subr.mxu0 %v381
        %624 = vmatpush1.msra.mxu0 %v380
        %625 = vmatprep.subr.mxu0 %v389
        %626 = vmatpush1.msra.mxu0 %v388
        %627 = vmatprep.subr.mxu0 %v397
        %628 = vmatpush1.msra.mxu0 %v396
        %629 = vmatprep.subr.mxu0 %v405
        %630 = vmatpush1.msra.mxu0 %v404
        %631 = vmatprep.subr.mxu0 %v413
        %632 = vmatpush1.msra.mxu0 %v412
        %633 = vmatprep.mubr.f32.mxu0 %v424
        %634 = vmatmul.mubr.f32.gmra.mrb[0].mxu0 %v423
        %v635 = vpop.f32.mrb[0].mxu0
        %v636 = vadd.f32 0.0, %v635
        %v637 = vpop.f32.mrb[0].mxu0
        %v638 = vadd.f32 0.0, %v637
        %639 = vdwg.mxu0
        %640 = vmatprep.subr.mxu0 %v167
        %641 = vmatpush1.msra.mxu0 %v166
        %642 = vmatprep.subr.mxu0 %v175
        %643 = vmatpush1.msra.mxu0 %v174
        %644 = vmatprep.subr.mxu0 %v183
        %645 = vmatpush1.msra.mxu0 %v182
        %646 = vmatprep.subr.mxu0 %v191
        %647 = vmatpush1.msra.mxu0 %v190
        %648 = vmatprep.subr.mxu0 %v199
        %649 = vmatpush1.msra.mxu0 %v198
        %650 = vmatprep.subr.mxu0 %v207
        %651 = vmatpush1.msra.mxu0 %v206
        %652 = vmatprep.subr.mxu0 %v215
        %653 = vmatpush1.msra.mxu0 %v214
        %654 = vmatprep.subr.mxu0 %v223
        %655 = vmatpush1.msra.mxu0 %v222
        %656 = vmatprep.subr.mxu0 %v231
        %657 = vmatpush1.msra.mxu0 %v230
        %658 = vmatprep.subr.mxu0 %v239
        %659 = vmatpush1.msra.mxu0 %v238
        %660 = vmatprep.subr.mxu0 %v247
        %661 = vmatpush1.msra.mxu0 %v246
        %662 = vmatprep.subr.mxu0 %v255
        %663 = vmatpush1.msra.mxu0 %v254
        %664 = vmatprep.subr.mxu0 %v263
        %665 = vmatpush1.msra.mxu0 %v262
        %666 = vmatprep.subr.mxu0 %v271
        %667 = vmatpush1.msra.mxu0 %v270
        %668 = vmatprep.subr.mxu0 %v279
        %669 = vmatpush1.msra.mxu0 %v278
        %670 = vmatprep.subr.mxu0 %v287
        %671 = vmatpush1.msra.mxu0 %v286
        %672 = vmatprep.subr.mxu0 %v295
        %673 = vmatpush1.msra.mxu0 %v294
        %674 = vmatprep.subr.mxu0 %v303
        %675 = vmatpush1.msra.mxu0 %v302
        %676 = vmatprep.subr.mxu0 %v311
        %677 = vmatpush1.msra.mxu0 %v310
        %678 = vmatprep.subr.mxu0 %v319
        %679 = vmatpush1.msra.mxu0 %v318
        %680 = vmatprep.subr.mxu0 %v327
        %681 = vmatpush1.msra.mxu0 %v326
        %682 = vmatprep.subr.mxu0 %v335
        %683 = vmatpush1.msra.mxu0 %v334
        %684 = vmatprep.subr.mxu0 %v343
        %685 = vmatpush1.msra.mxu0 %v342
        %686 = vmatprep.subr.mxu0 %v351
        %687 = vmatpush1.msra.mxu0 %v350
        %688 = vmatprep.subr.mxu0 %v359
        %689 = vmatpush1.msra.mxu0 %v358
        %690 = vmatprep.subr.mxu0 %v367
        %691 = vmatpush1.msra.mxu0 %v366
        %692 = vmatprep.subr.mxu0 %v375
        %693 = vmatpush1.msra.mxu0 %v374
        %694 = vmatprep.subr.mxu0 %v383
        %695 = vmatpush1.msra.mxu0 %v382
        %696 = vmatprep.subr.mxu0 %v391
        %697 = vmatpush1.msra.mxu0 %v390
        %698 = vmatprep.subr.mxu0 %v399
        %699 = vmatpush1.msra.mxu0 %v398
        %700 = vmatprep.subr.mxu0 %v407
        %701 = vmatpush1.msra.mxu0 %v406
        %702 = vmatprep.subr.mxu0 %v415
        %703 = vmatpush1.msra.mxu0 %v414
        %704 = vmatprep.mubr.f32.mxu0 %v424
        %705 = vmatmul.mubr.f32.gmra.mrb[0].mxu0 %v423
        %v706 = vpop.f32.mrb[0].mxu0
        %v707 = vadd.f32 0.0, %v706
        %v708 = vpop.f32.mrb[0].mxu0
        %v709 = vadd.f32 0.0, %v708
        %710 = vdwg.mxu0
        %v719 = vcombine.low %v494, %v496
        %v720 = vcombine.low %v565, %v567
        %v722 = vunpack.c.l.s4 1983009808
        %v723 = vunpack.c.0.s8 %v722
        %v724 = vlaneseq
        %v725 = vshrl.u32 %v724, 7
        %v726 = vsub.s32 %v723, %v725
        %v727 = vrot.slane %v719, %v726
        %v729 = vunpack.c.l.s4 1983009808
        %v730 = vunpack.c.0.s8 %v729
        %v731 = vlaneseq
        %v732 = vshrl.u32 %v731, 7
        %v733 = vsub.s32 %v730, %v732
        %v734 = vrot.slane %v720, %v733
        %v735 = vcombine.low %v727, %v734
        %v736 = vcombine.low %v636, %v638
        %v737 = vcombine.low %v707, %v709
        %v739 = vunpack.c.l.s4 1983009808
        %v740 = vunpack.c.0.s8 %v739
        %v741 = vlaneseq
        %v742 = vshrl.u32 %v741, 7
        %v743 = vsub.s32 %v740, %v742
        %v744 = vrot.slane %v736, %v743
        %v746 = vunpack.c.l.s4 1983009808
        %v747 = vunpack.c.0.s8 %v746
        %v748 = vlaneseq
        %v749 = vshrl.u32 %v748, 7
        %v750 = vsub.s32 %v747, %v749
        %v751 = vrot.slane %v737, %v750
        %v752 = vcombine.low %v744, %v751
        %755 = vst [vmem:[%s158] sm:$0xff] %v735
        %756 = vst [vmem:[%s158 + $0x8] sm:$0xff] %v752
        %p757 = scmp.lt.s32.totalorder %s14, 3
        %s758 = scalar_select %p757, %s14, 3
        %s759 = smul.addr %s758, 8
        %s760 = smul.addr %s759, 2
        %s761 = scalar_lea.vmem %s2, %s760
        // Predicated region
        $region33: #{bilinear_upsample.1} parent=27 // pred_check
          %p762 = pneg %p79
        $region34: #{bilinear_upsample.1} parent=27 // pred_check_branch
          %764 = sbr.rel (%p762) target = $region36
        $region35: #{bilinear_upsample.1} parent=27 // pred_region
          _
        $region36: #{bilinear_upsample.1} parent=27 // pred_fallthru
          _
      $region28: #{bilinear_upsample.1} parent=5 // pred_fallthru
        _
      %p765 = scmp.le.s32.totalorder 2, %s9
      // Predicated region
      $region37: #{bilinear_upsample.1} parent=5 // pred_check
        %p766 = pneg %p765
      $region38: #{bilinear_upsample.1} parent=5 // pred_check_branch
        %768 = sbr.rel (%p766) target = $region40
      $region39: #{bilinear_upsample.1} parent=5 // pred_region
        %s769 = ssub.s32 %s9, 2
        // Predicated region
        $region41: #{bilinear_upsample.1} parent=39 // pred_check
          %p770 = pneg %p85
        $region42: #{bilinear_upsample.1} parent=39 // pred_check_branch
          %772 = sbr.rel (%p770) target = $region44
        $region43: #{bilinear_upsample.1} parent=39 // pred_region
          %p773 = scmp.lt.s32.totalorder %s15, 3
          %s774 = scalar_select %p773, %s15, 3
          %s775 = smul.addr %s774, 8
          %s776 = smul.addr %s775, 2
          %s777 = scalar_lea.vmem %s2, %s776
        $region44: #{bilinear_upsample.1} parent=39 // pred_fallthru
          _
      $region40: #{bilinear_upsample.1} parent=5 // pred_fallthru
        _
    $region6: #{bilinear_upsample.1} parent=1 // loop_footer
      %s13 = sadd.s32 1, %s9
    $region7: #{bilinear_upsample.1} parent=1 // loop_footer_branch
      %8 = sbr.rel target = $region3
    $region8: #{bilinear_upsample.1} parent=1 // loop_exit
      _
    %778 = vsyncpa [#allocation3], 1
    %s779 = scalar_lea.sflag [#allocation3], 1
    %780 = vsyncpa %s779, 1

</llo_original>
